<compile_context>
chip_gen: v5e
topology: v5e:2x2
jax: 0.10.0
libtpu: 0.0.40
codegen_flags: <defaults>
</compile_context>

<pallas_src>
import functools

import jax
import jax.numpy as jnp
from jax.experimental import pallas as pl
from jax.experimental.pallas import tpu as pltpu

LANES = 128
_HID1 = 32   # layer1 width
_HID2 = 16   # layer2 / branch-hidden width


def _round_up(n, m):
    return ((n + m - 1) // m) * m


def pack_duel_dqn_params(params):
    """One-time packing of torch-convention (out, in) params into a single
    pre-transposed, branch-fused, lane-padded f32 slab of shape (rows, 128).

    Fused output weight layout (rows r3..r3+31, all 128 lanes):
      cols 0..A-1 : z[:, j] = value + advantage_j
      col  A      : z[:, A] = sum_j advantage_j   (per-row advantage sum,
                    no value term -> no cancellation when accumulating)
      cols > A    : zero
    """
    S = params["layer1_w"].shape[1]
    A = params["advantage_w"].shape[0]
    assert A + 1 <= LANES, "action_size must be <= 127 for this packing"

    s_pad = _round_up(max(S, 1), 8)
    r1 = s_pad              # W2 rows start
    r2 = r1 + _HID1         # fused value/adv hidden weight rows start
    r3 = r2 + _HID2         # fused output weight rows start
    r4 = r3 + _HID1         # bias band rows start (4 rows used, 8 allocated)
    rows = _round_up(r4 + 4, 8)

    f32 = jnp.float32
    slab = jnp.zeros((rows, LANES), dtype=f32)

    w1t = params["layer1_w"].T.astype(f32)                       # (S, 32)
    w2t = params["layer2_w"].T.astype(f32)                       # (32, 16)

    # fused branch-hidden weight: cols 0..15 -> value_layer1, 16..31 -> advantage_layer1
    w3f = jnp.concatenate(
        [params["value_layer1_w"].T, params["advantage_layer1_w"].T], axis=1
    ).astype(f32)                                                # (16, 32)
    b3f = jnp.concatenate(
        [params["value_layer1_b"], params["advantage_layer1_b"]]
    ).astype(f32)                                                # (32,)

    vcol = params["value_w"][0].astype(f32)                      # (16,)
    adv_wt = params["advantage_w"].T.astype(f32)                 # (16, A)
    adv_colsum = jnp.sum(params["advantage_w"].astype(f32), axis=0)   # (16,)

    w4f = jnp.zeros((_HID1, LANES), dtype=f32)
    w4f = w4f.at[:_HID2, :A].set(jnp.broadcast_to(vcol[:, None], (_HID2, A)))
    w4f = w4f.at[_HID2:, :A].set(adv_wt)
    w4f = w4f.at[_HID2:, A].set(adv_colsum)

    b4f = jnp.zeros((LANES,), dtype=f32)
    b4f = b4f.at[:A].set(params["value_b"][0] + params["advantage_b"].astype(f32))
    b4f = b4f.at[A].set(jnp.sum(params["advantage_b"].astype(f32)))

    slab = slab.at[:S, :_HID1].set(w1t)
    slab = slab.at[r1:r1 + _HID1, :_HID2].set(w2t)
    slab = slab.at[r2:r2 + _HID2, :_HID1].set(w3f)
    slab = slab.at[r3:r3 + _HID1, :].set(w4f)
    slab = slab.at[r4, :_HID1].set(params["layer1_b"].astype(f32))
    slab = slab.at[r4 + 1, :_HID2].set(params["layer2_b"].astype(f32))
    slab = slab.at[r4 + 2, :_HID1].set(b3f)
    slab = slab.at[r4 + 3, :].set(b4f)

    return {"slab": slab, "state_size": int(S), "action_size": int(A),
            "s_pad": int(s_pad)}


def _duel_dqn_kernel(x_ref, w_ref, o_ref, p_ref, *, A, B, TB, NB, s_pad, has_pad):
    r1 = s_pad
    r2 = r1 + _HID1
    r3 = r2 + _HID2
    r4 = r3 + _HID1

    j = pl.program_id(0)   # batch block (parallel; blocks are independent)

    # bias band (4 real rows, 8-row aligned load)
    bias = w_ref[r4:r4 + 8, :]            # (8, 128)
    b1 = bias[0:1, :_HID1]
    b2 = bias[1:2, :_HID2]
    b3 = bias[2:3, :_HID1]
    b4 = bias[3:4, :]

    x = x_ref[...]                        # (TB, s_pad) f32, zero-padded features
    h1 = jnp.maximum(
        jnp.dot(x, w_ref[0:s_pad, :_HID1],
                preferred_element_type=jnp.float32) + b1, 0.0)
    h2 = jnp.maximum(
        jnp.dot(h1, w_ref[r1:r1 + _HID1, :_HID2],
                preferred_element_type=jnp.float32) + b2, 0.0)
    va = jnp.maximum(
        jnp.dot(h2, w_ref[r2:r2 + _HID2, :_HID1],
                preferred_element_type=jnp.float32) + b3, 0.0)
    # z[:, j<A] = value + advantage_j ; z[:, A] = sum_j advantage_j ; cols >A = 0
    z = jnp.dot(va, w_ref[r3:r3 + _HID1, :],
                preferred_element_type=jnp.float32) + b4      # (TB, 128)

    # q before the global mean correction (finished in the wrapper).
    o_ref[...] = z[:, :A]

    # Per-block partial: lane A holds this block's sum of advantages.
    p_ref[...] = jnp.sum(z, axis=0, keepdims=True)            # (1, 128)

    if has_pad:
        # Only the last block contains padded rows; redo its partial masked.
        @pl.when(j == NB - 1)
        def _():
            row = jax.lax.broadcasted_iota(jnp.int32, (TB, LANES), 0)
            zm = jnp.where(row < (B - (NB - 1) * TB), z, 0.0)
            p_ref[...] = jnp.sum(zm, axis=0, keepdims=True)


def duel_dqn_forward(x, packed, *, block_b=2048):
    """x: (B, state_size). packed: output of pack_duel_dqn_params (built once)."""
    slab = packed["slab"]
    S = packed["state_size"]
    A = packed["action_size"]
    s_pad = packed["s_pad"]
    rows = slab.shape[0]

    B = x.shape[0]
    TB = min(block_b, _round_up(B, 8))
    B_pad = _round_up(B, TB)
    NB = B_pad // TB
    has_pad = B_pad != B

    x = x.astype(jnp.float32)
    if B_pad != B or s_pad != S:
        x = jnp.pad(x, ((0, B_pad - B), (0, s_pad - S)))

    kernel = functools.partial(_duel_dqn_kernel, A=A, B=B, TB=TB, NB=NB,
                               s_pad=s_pad, has_pad=has_pad)

    q_raw, partials = pl.pallas_call(
        kernel,
        out_shape=(
            jax.ShapeDtypeStruct((B_pad, A), jnp.float32),       # narrow q output
            jax.ShapeDtypeStruct((NB, 1, LANES), jnp.float32),   # per-block partials
        ),
        grid_spec=pltpu.PrefetchScalarGridSpec(
            num_scalar_prefetch=0,
            grid=(NB,),
            in_specs=[
                pl.BlockSpec((TB, s_pad), lambda j: (j, 0)),       # x: tiled over batch
                pl.BlockSpec((rows, LANES), lambda j: (0, 0)),     # weights: resident
            ],
            out_specs=[
                pl.BlockSpec((TB, A), lambda j: (j, 0)),           # q tile
                pl.BlockSpec((None, 1, LANES), lambda j: (j, 0, 0)),  # partial row
            ],
        ),
        compiler_params=pltpu.CompilerParams(
            # Blocks are independent; on v7x this shards them across the two
            # TensorCores.  (For very large TB on v5e raise vmem_limit_bytes.)
            dimension_semantics=("parallel",),
        ),
    )(x, slab)

    # Finish torch's global advantage.mean() in the wrapper: lane A of each
    # partial row is that block's sum of advantages over its real rows.
    adv_sum = jnp.sum(partials[:, 0, A])
    return q_raw[:B, :] - adv_sum * (1.0 / float(B * A))


def init_params(key, state_size, action_size):
    """Deterministic init mirroring DuelDQN.__init__ shapes (torch (out, in))."""
    shapes = {
        "layer1_w": (32, state_size), "layer1_b": (32,),
        "layer2_w": (16, 32), "layer2_b": (16,),
        "value_layer1_w": (16, 16), "value_layer1_b": (16,),
        "value_w": (1, 16), "value_b": (1,),
        "advantage_layer1_w": (16, 16), "advantage_layer1_b": (16,),
        "advantage_w": (action_size, 16), "advantage_b": (action_size,),
    }
    params = {}
    keys = jax.random.split(key, len(shapes))
    for k, (name, shp) in zip(keys, sorted(shapes.items())):
        params[name] = jax.random.normal(k, shp, dtype=jnp.float32) * 0.1
    return params


def duel_dqn_ref(x, p):
    """Pure-JAX reference with the original module's semantics."""
    h1 = jax.nn.relu(x @ p["layer1_w"].T + p["layer1_b"])
    h2 = jax.nn.relu(h1 @ p["layer2_w"].T + p["layer2_b"])
    v1 = jax.nn.relu(h2 @ p["value_layer1_w"].T + p["value_layer1_b"])
    value = v1 @ p["value_w"].T + p["value_b"]
    a1 = jax.nn.relu(h2 @ p["advantage_layer1_w"].T + p["advantage_layer1_b"])
    adv = a1 @ p["advantage_w"].T + p["advantage_b"]
    # torch's advantage.mean() with no dim = global scalar mean (kept as-is).
    return value + (adv - jnp.mean(adv))


if __name__ == "__main__":
    state_size = 8
    action_size = 4
    batch = 2

    key = jax.random.PRNGKey(0)
    kx, kp = jax.random.split(key)
    x = jax.random.normal(kx, (batch, state_size), dtype=jnp.float32)
    params = init_params(kp, state_size, action_size)

    packed = pack_duel_dqn_params(params)   # done once; reused every forward call

    q = duel_dqn_forward(x, packed)
    q = jax.block_until_ready(q)

    q_ref = duel_dqn_ref(x, params)
    assert q.shape == (batch, action_size)
    assert jnp.allclose(q, q_ref, atol=1e-5, rtol=1e-5), (q, q_ref)

    # Second check: exercises the multi-block batch grid + padded-last-block
    # masking path (B=10 padded to 16 rows, two batch blocks of 8).
    x2 = jax.random.normal(jax.random.PRNGKey(1), (10, state_size), dtype=jnp.float32)
    q2 = jax.block_until_ready(duel_dqn_forward(x2, packed, block_b=8))
    q2_ref = duel_dqn_ref(x2, params)
    assert q2.shape == (10, action_size)
    assert jnp.allclose(q2, q2_ref, atol=1e-5, rtol=1e-5), (q2, q2_ref)

    print("KERNEL_OK")
</pallas_src>

<mosaic_0001>
module attributes {stable_mosaic.version = 11 : i64} {
  func.func @_duel_dqn_kernel(%arg0: i32, %arg1: memref<8x8xf32, #tpu.memory_space<vmem>>, %arg2: memref<96x128xf32, #tpu.memory_space<vmem>>, %arg3: memref<8x4xf32, #tpu.memory_space<vmem>>, %arg4: memref<1x1x128xf32, #tpu.memory_space<vmem>>) attributes {dimension_semantics = [#tpu.dimension_semantics<parallel>], iteration_bounds = array<i64: 1>, scalar_prefetch = 0 : i64, scratch_operands = 0 : i64, tpu.core_type = #tpu.core_type<tc>, window_params = [{transform_indices = @transform_0, window_bounds = array<i64: 8, 8>}, {pipeline_mode = #tpu.pipeline_mode<synchronous>, transform_indices = @transform_1, window_bounds = array<i64: 96, 128>}, {transform_indices = @transform_2, window_bounds = array<i64: 8, 4>}, {transform_indices = @transform_3, window_bounds = array<i64: 1, 1, 128>}]} {
    %c88 = arith.constant 88 : index
    %c0 = arith.constant 0 : index
    %0 = vector.load %arg2[%c88, %c0] : memref<96x128xf32, #tpu.memory_space<vmem>>, vector<8x128xf32>
    %1 = vector.extract_strided_slice %0 {offsets = [0, 0], sizes = [1, 32], strides = [1, 1]} : vector<8x128xf32> to vector<1x32xf32>
    %2 = vector.extract_strided_slice %0 {offsets = [1, 0], sizes = [1, 16], strides = [1, 1]} : vector<8x128xf32> to vector<1x16xf32>
    %3 = vector.extract_strided_slice %0 {offsets = [2, 0], sizes = [1, 32], strides = [1, 1]} : vector<8x128xf32> to vector<1x32xf32>
    %4 = vector.extract_strided_slice %0 {offsets = [3, 0], sizes = [1, 128], strides = [1, 1]} : vector<8x128xf32> to vector<1x128xf32>
    %c0_0 = arith.constant 0 : index
    %c0_1 = arith.constant 0 : index
    %5 = vector.load %arg1[%c0_0, %c0_1] : memref<8x8xf32, #tpu.memory_space<vmem>>, vector<8x8xf32>
    %c0_2 = arith.constant 0 : index
    %c0_3 = arith.constant 0 : index
    %6 = vector.load %arg2[%c0_2, %c0_3] : memref<96x128xf32, #tpu.memory_space<vmem>>, vector<8x32xf32>
    %cst = arith.constant dense<0.000000e+00> : vector<8x32xf32>
    %7 = tpu.matmul %5, %6, %cst {dimension_numbers = #tpu.dot_dimension_numbers<[1], [0], [0], [1], [0, 0, 1, 1], [], []>} : vector<8x8xf32>, vector<8x32xf32>, vector<8x32xf32> -> vector<8x32xf32>
    %8 = vector.broadcast %1 : vector<1x32xf32> to vector<8x32xf32>
    %9 = arith.addf %7, %8 : vector<8x32xf32>
    %cst_4 = arith.constant 0.000000e+00 : f32
    %10 = vector.broadcast %cst_4 : f32 to vector<8x32xf32>
    %11 = arith.maximumf %9, %10 : vector<8x32xf32>
    %c8 = arith.constant 8 : index
    %c0_5 = arith.constant 0 : index
    %12 = vector.load %arg2[%c8, %c0_5] : memref<96x128xf32, #tpu.memory_space<vmem>>, vector<32x16xf32>
    %cst_6 = arith.constant dense<0.000000e+00> : vector<8x16xf32>
    %13 = tpu.matmul %11, %12, %cst_6 {dimension_numbers = #tpu.dot_dimension_numbers<[1], [0], [0], [1], [0, 0, 1, 1], [], []>} : vector<8x32xf32>, vector<32x16xf32>, vector<8x16xf32> -> vector<8x16xf32>
    %14 = vector.broadcast %2 : vector<1x16xf32> to vector<8x16xf32>
    %15 = arith.addf %13, %14 : vector<8x16xf32>
    %cst_7 = arith.constant 0.000000e+00 : f32
    %16 = vector.broadcast %cst_7 : f32 to vector<8x16xf32>
    %17 = arith.maximumf %15, %16 : vector<8x16xf32>
    %c40 = arith.constant 40 : index
    %c0_8 = arith.constant 0 : index
    %18 = vector.load %arg2[%c40, %c0_8] : memref<96x128xf32, #tpu.memory_space<vmem>>, vector<16x32xf32>
    %cst_9 = arith.constant dense<0.000000e+00> : vector<8x32xf32>
    %19 = tpu.matmul %17, %18, %cst_9 {dimension_numbers = #tpu.dot_dimension_numbers<[1], [0], [0], [1], [0, 0, 1, 1], [], []>} : vector<8x16xf32>, vector<16x32xf32>, vector<8x32xf32> -> vector<8x32xf32>
    %20 = vector.broadcast %3 : vector<1x32xf32> to vector<8x32xf32>
    %21 = arith.addf %19, %20 : vector<8x32xf32>
    %cst_10 = arith.constant 0.000000e+00 : f32
    %22 = vector.broadcast %cst_10 : f32 to vector<8x32xf32>
    %23 = arith.maximumf %21, %22 : vector<8x32xf32>
    %c56 = arith.constant 56 : index
    %c0_11 = arith.constant 0 : index
    %24 = vector.load %arg2[%c56, %c0_11] : memref<96x128xf32, #tpu.memory_space<vmem>>, vector<32x128xf32>
    %cst_12 = arith.constant dense<0.000000e+00> : vector<8x128xf32>
    %25 = tpu.matmul %23, %24, %cst_12 {dimension_numbers = #tpu.dot_dimension_numbers<[1], [0], [0], [1], [0, 0, 1, 1], [], []>} : vector<8x32xf32>, vector<32x128xf32>, vector<8x128xf32> -> vector<8x128xf32>
    %26 = vector.broadcast %4 : vector<1x128xf32> to vector<8x128xf32>
    %27 = arith.addf %25, %26 : vector<8x128xf32>
    %28 = vector.extract_strided_slice %27 {offsets = [0, 0], sizes = [8, 4], strides = [1, 1]} : vector<8x128xf32> to vector<8x4xf32>
    %c0_13 = arith.constant 0 : index
    %c0_14 = arith.constant 0 : index
    %29 = vector.load %arg3[%c0_13, %c0_14] : memref<8x4xf32, #tpu.memory_space<vmem>>, vector<8x4xf32>
    tpu.vector_store %arg3[%c0_13, %c0_14], %28 {strides = array<i32>} : memref<8x4xf32, #tpu.memory_space<vmem>>, vector<8x4xf32>,
    %cst_15 = arith.constant dense<0.000000e+00> : vector<128xf32>
    %30 = vector.multi_reduction <add>, %27, %cst_15 [0] : vector<8x128xf32> to vector<128xf32>
    %31 = vector.shape_cast %30 : vector<128xf32> to vector<1x128xf32>
    %c0_16 = arith.constant 0 : index
    %c0_17 = arith.constant 0 : index
    %c0_18 = arith.constant 0 : index
    %32 = vector.load %arg4[%c0_16, %c0_17, %c0_18] : memref<1x1x128xf32, #tpu.memory_space<vmem>>, vector<1x1x128xf32>
    %33 = vector.shape_cast %32 : vector<1x1x128xf32> to vector<1x128xf32>
    %34 = vector.shape_cast %31 : vector<1x128xf32> to vector<1x1x128xf32>
    tpu.vector_store %arg4[%c0_16, %c0_17, %c0_18], %34 {strides = array<i32>} : memref<1x1x128xf32, #tpu.memory_space<vmem>>, vector<1x1x128xf32>,
    %c0_i32 = arith.constant 0 : i32
    %35 = arith.cmpi eq, %arg0, %c0_i32 : i32
    %36 = arith.extui %35 : i1 to i32
    %c0_i32_19 = arith.constant 0 : i32
    %37 = arith.cmpi ne, %36, %c0_i32_19 : i32
    scf.if %37 {
      %38 = tpu.iota {dimensions = array<i32: 0>} : vector<8x128xi32>
      %c2_i32 = arith.constant 2 : i32
      %39 = vector.broadcast %c2_i32 : i32 to vector<8x128xi32>
      %40 = arith.cmpi slt, %38, %39 : vector<8x128xi32>
      %cst_20 = arith.constant 0.000000e+00 : f32
      %41 = vector.broadcast %cst_20 : f32 to vector<8x128xf32>
      %42 = arith.select %40, %27, %41 : vector<8x128xi1>, vector<8x128xf32>
      %cst_21 = arith.constant dense<0.000000e+00> : vector<128xf32>
      %43 = vector.multi_reduction <add>, %42, %cst_21 [0] : vector<8x128xf32> to vector<128xf32>
      %44 = vector.shape_cast %43 : vector<128xf32> to vector<1x128xf32>
      %c0_22 = arith.constant 0 : index
      %c0_23 = arith.constant 0 : index
      %c0_24 = arith.constant 0 : index
      %45 = vector.load %arg4[%c0_22, %c0_23, %c0_24] : memref<1x1x128xf32, #tpu.memory_space<vmem>>, vector<1x1x128xf32>
      %46 = vector.shape_cast %45 : vector<1x1x128xf32> to vector<1x128xf32>
      %47 = vector.shape_cast %44 : vector<1x128xf32> to vector<1x1x128xf32>
      tpu.vector_store %arg4[%c0_22, %c0_23, %c0_24], %47 {strides = array<i32>} : memref<1x1x128xf32, #tpu.memory_space<vmem>>, vector<1x1x128xf32>,
    } else {
    }
    return
  }
  func.func @transform_0(%arg0: i32) -> (i32, i32) {
    %c0_i32 = arith.constant 0 : i32
    %c0_i32_0 = arith.constant 0 : i32
    return %arg0, %c0_i32 : i32, i32
  }
  func.func @transform_1(%arg0: i32) -> (i32, i32) {
    %c0_i32 = arith.constant 0 : i32
    %c0_i32_0 = arith.constant 0 : i32
    %c0_i32_1 = arith.constant 0 : i32
    return %c0_i32, %c0_i32_0 : i32, i32
  }
  func.func @transform_2(%arg0: i32) -> (i32, i32) {
    %c0_i32 = arith.constant 0 : i32
    %c0_i32_0 = arith.constant 0 : i32
    return %arg0, %c0_i32 : i32, i32
  }
  func.func @transform_3(%arg0: i32) -> (i32, i32, i32) {
    %c0_i32 = arith.constant 0 : i32
    %c0_i32_0 = arith.constant 0 : i32
    %c0_i32_1 = arith.constant 0 : i32
    return %arg0, %c0_i32, %c0_i32_0 : i32, i32, i32
  }
}

</mosaic_0001>

<llo_original>
// kernel: tpu_custom_call.1
$region0: #{tpu_custom_call.1}
  #allocation0 [shape = 'u32[]', space=smem, size = 0x4, offset = 0x4, fixed_abs, tag = 'smem constant byte address 0x4 - core index']
  #allocation1 [shape = 'u32[72,128]{1,0:T(1,128)}', space=vmem, size = 0x9000, scoped, tag = 'internal scratch']
  %s0 = inlined_call_operand.hbm [shape: f32[8,8], index: 0, kind: input, shape index: {}]
  %s1 = inlined_call_operand.hbm [shape: f32[96,128], index: 1, kind: input, shape index: {}]
  %s2 = inlined_call_operand.vmem [shape: f32[8,4], index: 2, kind: output, shape index: {0}]
  %s3 = inlined_call_operand.hbm [shape: f32[1,1,128], index: 3, kind: output, shape index: {1}]
  %4 = xla_tuple %s2, %s3
  %s5 = sld [smem:[#allocation0]]
  $region38: #{tpu_custom_call.1} parent=0
    _
  %s7 = ssub.s32 1, %s5
  %s8 = scalar_select 0, %s7, %s5
  $region1: #{tpu_custom_call.1} parent=0
    #allocation2 [shape = 'u8[4096]{0}', space=vmem, size = 0x1000, scoped, tag = 'input window, operand 0, single buffered']
    #allocation3 [shape = 's32[1]{0}', space=sflag, size = 0x4, scoped, tag = 'scoped memory for tpu_custom_call.1']
    #allocation4 [shape = 's32[1]{0}', space=sflag, size = 0x4, scoped, tag = 'scoped memory for tpu_custom_call.1']
    #allocation5 [shape = 'u8[49152]{0}', space=vmem, size = 0xc000, scoped, tag = 'input window, operand 1, single buffered']
    #allocation6 [shape = 's32[1]{0}', space=sflag, size = 0x4, scoped, tag = 'scoped memory for tpu_custom_call.1']
    #allocation7 [shape = 'u8[512]{0}', space=vmem, size = 0x400, scoped, tag = 'output window, operand 1, single buffered']
    %9 = vsyncpa [#allocation3], 0
    %10 = vsyncpa [#allocation6], 0
    %11 = vsyncpa [#allocation4], 0
    // Predicated region
    $region2: #{tpu_custom_call.1} parent=1 // pred_check
      _
    $region3: #{tpu_custom_call.1} parent=1 // pred_check_branch
      %13 = sbr.rel (0) target = $region5
    $region4: #{tpu_custom_call.1} parent=1 // pred_region
      %15 = vsyncadd [#allocation3], 0
      %s17 = sshll.u32 %s0, 4
      %s18 = int_to_ptr.hbm [resolvable:$true] %s17
      %s19 = sshll.u32 [#allocation2], 4
      %s20 = int_to_ptr.vmem [resolvable:$true] %s19
      %22 = dma.hbm_to_vmem [thread:$0]  %s18, 128, %s20, [#allocation3]
    $region5: #{tpu_custom_call.1} parent=1 // pred_fallthru
      _
    // Predicated region
    $region6: #{tpu_custom_call.1} parent=1 // pred_check
      _
    $region7: #{tpu_custom_call.1} parent=1 // pred_check_branch
      %24 = sbr.rel (0) target = $region9
    $region8: #{tpu_custom_call.1} parent=1 // pred_region
      %26 = vsyncadd [#allocation6], 0
      %s27 = sshll.u32 %s1, 4
      %s28 = int_to_ptr.hbm [resolvable:$true] %s27
      %s29 = sshll.u32 [#allocation5], 4
      %s30 = int_to_ptr.vmem [resolvable:$true] %s29
      %35 = dma.hbm_to_vmem [thread:$0]  %s28, 1536, %s30, [#allocation6], 128, 128, 8
    $region9: #{tpu_custom_call.1} parent=1 // pred_fallthru
      _
    // Predicated region
    $region10: #{tpu_custom_call.1} parent=1 // pred_check
      _
    $region11: #{tpu_custom_call.1} parent=1 // pred_check_branch
      %37 = sbr.rel (0) target = $region13
    $region12: #{tpu_custom_call.1} parent=1 // pred_region
      %39 = dma.done [#allocation3], 128
    $region13: #{tpu_custom_call.1} parent=1 // pred_fallthru
      _
    // Predicated region
    $region14: #{tpu_custom_call.1} parent=1 // pred_check
      _
    $region15: #{tpu_custom_call.1} parent=1 // pred_check_branch
      %41 = sbr.rel (0) target = $region17
    $region16: #{tpu_custom_call.1} parent=1 // pred_region
      %43 = dma.done [#allocation6], 1536
    $region17: #{tpu_custom_call.1} parent=1 // pred_fallthru
      _
    %v44 = vld [vmem:[#allocation5 + $0x58] sm:$0xff]
    %v45 = vld [vmem:[#allocation2] sm:$0xff]
    %v46 = vld [vmem:[#allocation5] sm:$0xff]
    %v47 = vperm.slane %v44, 0
    %vm48 = vcmask 64512
    %v50 = vsel %vm48, %v45, 0
    %52 = vmatpush.msra.mxu0 0.0
    %53 = vmatpush.msra.mxu0 0.0
    %54 = vmatpush.msra.mxu0 0.0
    %55 = vmatpush.msra.mxu0 0.0
    %56 = vmatpush.msra.mxu0 0.0
    %57 = vmatpush.msra.mxu0 0.0
    %58 = vmatpush.msra.mxu0 0.0
    %59 = vmatpush.msra.mxu0 0.0
    %60 = vmatpush.msra.mxu0 0.0
    %61 = vmatpush.msra.mxu0 0.0
    %62 = vmatpush.msra.mxu0 0.0
    %63 = vmatpush.msra.mxu0 0.0
    %64 = vmatpush.msra.mxu0 0.0
    %65 = vmatpush.msra.mxu0 0.0
    %66 = vmatpush.msra.mxu0 0.0
    %67 = vmatpush.msra.mxu0 %v46
    %68 = vmatmul.f32.gmra.mxu0 %v50
    %v69 = vpop.f32.mrf.mxu0
    %v70 = vadd.f32 %v47, %v69
    %71 = vdwg.mxu0
    %v72 = vmax.f32 %v70, 0.0
    %v73 = vld [vmem:[#allocation5 + $0x8] sm:$0xff]
    %v74 = vld [vmem:[#allocation5 + $0x10] sm:$0xff]
    %v75 = vld [vmem:[#allocation5 + $0x18] sm:$0xff]
    %v76 = vld [vmem:[#allocation5 + $0x20] sm:$0xff]
    %v77 = vperm.slane %v44, 1
    %vm78 = vcmask 261120
    %v80 = vsel %vm78, %v72, 0
    %82 = vmatpush.msra.mxu0 0.0
    %83 = vmatpush.msra.mxu0 0.0
    %84 = vmatpush.msra.mxu0 0.0
    %85 = vmatpush.msra.mxu0 0.0
    %86 = vmatpush.msra.mxu0 0.0
    %87 = vmatpush.msra.mxu0 0.0
    %88 = vmatpush.msra.mxu0 0.0
    %89 = vmatpush.msra.mxu0 0.0
    %90 = vmatpush.msra.mxu0 0.0
    %91 = vmatpush.msra.mxu0 0.0
    %92 = vmatpush.msra.mxu0 0.0
    %93 = vmatpush.msra.mxu0 0.0
    %94 = vmatpush.msra.mxu0 %v76
    %95 = vmatpush.msra.mxu0 %v75
    %96 = vmatpush.msra.mxu0 %v74
    %97 = vmatpush.msra.mxu0 %v73
    %98 = vmatmul.f32.gmra.mxu0 %v80
    %v99 = vpop.f32.mrf.mxu0
    %v100 = vadd.f32 %v77, %v99
    %101 = vdwg.mxu0
    %v102 = vmax.f32 %v100, 0.0
    %v103 = vld [vmem:[#allocation5 + $0x28] sm:$0xff]
    %v104 = vld [vmem:[#allocation5 + $0x30] sm:$0xff]
    %v105 = vperm.slane %v44, 2
    %vm106 = vcmask 130048
    %v108 = vsel %vm106, %v102, 0
    %110 = vmatpush.msra.mxu0 0.0
    %111 = vmatpush.msra.mxu0 0.0
    %112 = vmatpush.msra.mxu0 0.0
    %113 = vmatpush.msra.mxu0 0.0
    %114 = vmatpush.msra.mxu0 0.0
    %115 = vmatpush.msra.mxu0 0.0
    %116 = vmatpush.msra.mxu0 0.0
    %117 = vmatpush.msra.mxu0 0.0
    %118 = vmatpush.msra.mxu0 0.0
    %119 = vmatpush.msra.mxu0 0.0
    %120 = vmatpush.msra.mxu0 0.0
    %121 = vmatpush.msra.mxu0 0.0
    %122 = vmatpush.msra.mxu0 0.0
    %123 = vmatpush.msra.mxu0 0.0
    %124 = vmatpush.msra.mxu0 %v104
    %125 = vmatpush.msra.mxu0 %v103
    %126 = vmatmul.f32.gmra.mxu0 %v108
    %v127 = vpop.f32.mrf.mxu0
    %v128 = vadd.f32 %v105, %v127
    %129 = vdwg.mxu0
    %v130 = vmax.f32 %v128, 0.0
    %v131 = vld [vmem:[#allocation5 + $0x38] sm:$0xff]
    %v132 = vld [vmem:[#allocation5 + $0x40] sm:$0xff]
    %v133 = vld [vmem:[#allocation5 + $0x48] sm:$0xff]
    %v134 = vld [vmem:[#allocation5 + $0x50] sm:$0xff]
    %v135 = vperm.slane %v44, 3
    %v137 = vsel %vm78, %v130, 0
    %139 = vmatpush.msra.mxu0 0.0
    %140 = vmatpush.msra.mxu0 0.0
    %141 = vmatpush.msra.mxu0 0.0
    %142 = vmatpush.msra.mxu0 0.0
    %143 = vmatpush.msra.mxu0 0.0
    %144 = vmatpush.msra.mxu0 0.0
    %145 = vmatpush.msra.mxu0 0.0
    %146 = vmatpush.msra.mxu0 0.0
    %147 = vmatpush.msra.mxu0 0.0
    %148 = vmatpush.msra.mxu0 0.0
    %149 = vmatpush.msra.mxu0 0.0
    %150 = vmatpush.msra.mxu0 0.0
    %151 = vmatpush.msra.mxu0 %v134
    %152 = vmatpush.msra.mxu0 %v133
    %153 = vmatpush.msra.mxu0 %v132
    %154 = vmatpush.msra.mxu0 %v131
    %155 = vmatmul.f32.gmra.mxu0 %v137
    %v156 = vpop.f32.mrf.mxu0
    %v157 = vadd.f32 %v135, %v156
    %158 = vdwg.mxu0
    %vm159 = vcmask 31744
    %160 = vst.msk [vmem:[%s2] sm:$0xff] %vm159, %v157
    %v161 = vrot.slane %v157, 4
    %v162 = vadd.f32 %v157, %v161
    %v163 = vrot.slane %v162, 2
    %v164 = vadd.f32 %v162, %v163
    %v165 = vrot.slane %v164, 1
    %v166 = vadd.f32 %v164, %v165
    %167 = vst [vmem:[#allocation7] sm:$0x1] %v166
    %p168 = scmp.eq.s32.totalorder 0, 0
    // Predicated region
    $region18: #{tpu_custom_call.1} parent=1 // pred_check
      %p169 = pneg %p168
    $region19: #{tpu_custom_call.1} parent=1 // pred_check_branch
      %171 = sbr.rel (%p169) target = $region21
    $region20: #{tpu_custom_call.1} parent=1 // pred_region
      %v172 = vlaneseq
      %v173 = vshrl.u32 %v172, 7
      %vm174 = vcmp.lt.s32.totalorder %v173, 2
      %v175 = vsel %vm174, %v157, 0.0
      %v176 = vrot.slane %v175, 4
      %v177 = vadd.f32 %v175, %v176
      %v178 = vrot.slane %v177, 2
      %v179 = vadd.f32 %v177, %v178
      %v180 = vrot.slane %v179, 1
      %v181 = vadd.f32 %v179, %v180
      %182 = vst [vmem:[#allocation7] sm:$0x1] %v181
    $region21: #{tpu_custom_call.1} parent=1 // pred_fallthru
      _
    // Predicated region
    $region22: #{tpu_custom_call.1} parent=1 // pred_check
      _
    $region23: #{tpu_custom_call.1} parent=1 // pred_check_branch
      %184 = sbr.rel (0) target = $region25
    $region24: #{tpu_custom_call.1} parent=1 // pred_region
      _
    $region25: #{tpu_custom_call.1} parent=1 // pred_fallthru
      _
    // Predicated region
    $region26: #{tpu_custom_call.1} parent=1 // pred_check
      _
    $region27: #{tpu_custom_call.1} parent=1 // pred_check_branch
      %186 = sbr.rel (0) target = $region29
    $region28: #{tpu_custom_call.1} parent=1 // pred_region
      %188 = vsyncadd [#allocation4], 0
      %s190 = sshll.u32 [#allocation7], 4
      %s191 = int_to_ptr.vmem [resolvable:$true] %s190
      %s192 = sshll.u32 %s3, 4
      %s193 = int_to_ptr.hbm [resolvable:$true] %s192
      %195 = dma.vmem_to_hbm [thread:$0]  %s191, 16, %s193, [#allocation4]
    $region29: #{tpu_custom_call.1} parent=1 // pred_fallthru
      _
    // Predicated region
    $region30: #{tpu_custom_call.1} parent=1 // pred_check
      _
    $region31: #{tpu_custom_call.1} parent=1 // pred_check_branch
      %197 = sbr.rel (0) target = $region33
    $region32: #{tpu_custom_call.1} parent=1 // pred_region
      _
    $region33: #{tpu_custom_call.1} parent=1 // pred_fallthru
      _
    // Predicated region
    $region34: #{tpu_custom_call.1} parent=1 // pred_check
      _
    $region35: #{tpu_custom_call.1} parent=1 // pred_check_branch
      %199 = sbr.rel (0) target = $region37
    $region36: #{tpu_custom_call.1} parent=1 // pred_region
      %201 = dma.done [#allocation4], 16
    $region37: #{tpu_custom_call.1} parent=1 // pred_fallthru
      _
    %202 = vsyncpa [#allocation3], 1
    %203 = vsyncpa [#allocation6], 1
    %204 = vsyncpa [#allocation4], 1

</llo_original>
